<compile_context>
chip_gen: v5e
topology: v5e:2x2
jax: 0.10.0
libtpu: 0.0.40
codegen_flags: <defaults>
</compile_context>

<pallas_src>
import functools

import jax
import jax.numpy as jnp
from jax.experimental import pallas as pl
from jax.experimental.pallas import tpu as pltpu

HID_1, HID_2, HID_3, HID_OUT = 170, 29, 5, 1
# (8,128)/bf16-friendly padded hidden widths
H1P, H2P, H3P = 176, 32, 8


def _round_up(x, m):
    return (x + m - 1) // m * m


def mlp_kernel(x_ref, w1_ref, b1_ref, w2_ref, b2_ref, w3_ref, b3_ref,
               w4r_ref, b4_ref, o_ref):
    # Layers 1-3: bf16 operands on the MXU, f32 accumulation, tanh on the EUP.
    x = x_ref[...].astype(jnp.bfloat16)
    h1 = jnp.tanh(
        jnp.dot(x, w1_ref[...], preferred_element_type=jnp.float32)
        + b1_ref[...])
    h2 = jnp.tanh(
        jnp.dot(h1.astype(jnp.bfloat16), w2_ref[...],
                preferred_element_type=jnp.float32) + b2_ref[...])
    h3 = jnp.tanh(
        jnp.dot(h2.astype(jnp.bfloat16), w3_ref[...],
                preferred_element_type=jnp.float32) + b3_ref[...])
    # Final layer (in=8, out=1) on VPU/XLU, emitted lane-dense:
    #   scale by w4 row -> transpose (tb,8)->(8,tb) -> sublane reduce -> (1,tb).
    h3w_t = (h3 * w4r_ref[...]).T                                  # (H3P, tb)
    v = jnp.sum(h3w_t, axis=0, keepdims=True) + b4_ref[...]        # (1, tb)
    o_ref[...] = v.astype(o_ref.dtype)


def prepare_params(params):
    """Pad/cast params once (hoisted out of the forward).  Padded rows/cols are
    exact zeros, so numerics match the unpadded model (up to bf16 operands)."""
    w1, b1, w2, b2, w3, b3, w4, b4 = params
    d_obs = w1.shape[0]
    w1p = (jnp.zeros((d_obs, H1P), jnp.float32)
           .at[:, :HID_1].set(w1).astype(jnp.bfloat16))
    b1p = jnp.zeros((1, H1P), jnp.float32).at[:, :HID_1].set(b1)
    w2p = (jnp.zeros((H1P, H2P), jnp.float32)
           .at[:HID_1, :HID_2].set(w2).astype(jnp.bfloat16))
    b2p = jnp.zeros((1, H2P), jnp.float32).at[:, :HID_2].set(b2)
    w3p = (jnp.zeros((H2P, H3P), jnp.float32)
           .at[:HID_2, :HID_3].set(w3).astype(jnp.bfloat16))
    b3p = jnp.zeros((1, H3P), jnp.float32).at[:, :HID_3].set(b3)
    # Final weight kept as an f32 (1, H3P) row for the VPU/XLU path.
    w4r = jnp.zeros((1, H3P), jnp.float32).at[:, :HID_3].set(w4.T)
    b4p = b4.reshape(1, 1)
    return w1p, b1p, w2p, b2p, w3p, b3p, w4r, b4p


@functools.partial(jax.jit, static_argnames=("block_rows",))
def network_forward(obs, padded_params, block_rows=2048):
    w1p, b1p, w2p, b2p, w3p, b3p, w4r, b4p = padded_params
    B, D = obs.shape

    # Large batch tile (amortizes per-step overhead), capped at ceil(B/2) so the
    # "parallel" grid has >=2 steps (keeps both v7x TensorCores busy).
    tb = min(block_rows, _round_up((B + 1) // 2, 8))
    num_tiles = (B + tb - 1) // tb  # ragged last block -> no jnp.pad HBM copy

    const2 = lambda i: (0, 0)  # weights/biases: same block each step -> resident
    out = pl.pallas_call(
        mlp_kernel,
        # Lane-dense output: one (1, tb) row per grid step.
        out_shape=jax.ShapeDtypeStruct((num_tiles, 1, tb), jnp.float32),
        grid=(num_tiles,),
        in_specs=[
            pl.BlockSpec((tb, D), lambda i: (i, 0)),   # obs tile (pipelined)
            pl.BlockSpec(w1p.shape, const2),
            pl.BlockSpec(b1p.shape, const2),
            pl.BlockSpec(w2p.shape, const2),
            pl.BlockSpec(b2p.shape, const2),
            pl.BlockSpec(w3p.shape, const2),
            pl.BlockSpec(b3p.shape, const2),
            pl.BlockSpec(w4r.shape, const2),
            pl.BlockSpec(b4p.shape, const2),
        ],
        out_specs=pl.BlockSpec((None, 1, tb), lambda i: (i, 0, 0)),
        compiler_params=pltpu.CompilerParams(
            dimension_semantics=("parallel",)),  # megacore sharding on v7x
    )(obs, w1p, b1p, w2p, b2p, w3p, b3p, w4r, b4p)
    # (num_tiles, 1, tb) -> flat (contiguous) -> first B rows -> (B, 1).
    return out.reshape(-1)[:B].reshape(B, 1)


def init_params(key, d_obs):
    # Deterministic init mimicking nn.Linear: U(-1/sqrt(fan_in), 1/sqrt(fan_in)).
    dims = [(d_obs, HID_1), (HID_1, HID_2), (HID_2, HID_3), (HID_3, HID_OUT)]
    params = []
    for fan_in, fan_out in dims:
        key, kw, kb = jax.random.split(key, 3)
        bound = 1.0 / jnp.sqrt(fan_in)
        w = jax.random.uniform(kw, (fan_in, fan_out), jnp.float32, -bound, bound)
        b = jax.random.uniform(kb, (1, fan_out), jnp.float32, -bound, bound)
        params += [w, b]
    return tuple(params)


def reference_forward(obs, params):
    w1, b1, w2, b2, w3, b3, w4, b4 = params
    h1 = jnp.tanh(obs @ w1 + b1)
    h2 = jnp.tanh(h1 @ w2 + b2)
    h3 = jnp.tanh(h2 @ w3 + b3)
    return h3 @ w4 + b4


if __name__ == "__main__":
    key = jax.random.PRNGKey(0)
    D_obs, batch = 32, 8
    key, k_obs = jax.random.split(key)
    obs = jax.random.normal(k_obs, (batch, D_obs), dtype=jnp.float32)
    params = init_params(key, D_obs)
    padded = prepare_params(params)  # padded/cast once, reused across calls

    out = network_forward(obs, padded)
    jax.block_until_ready(out)
    ref = reference_forward(obs, params)
    assert out.shape == (batch, 1)
    # bf16 matmul operands (f32 accumulation) -> relaxed tolerance vs f32 ref.
    assert jnp.allclose(out, ref, atol=2e-2, rtol=2e-2)

    # Gridded + ragged-batch path (non-multiple batch, no jnp.pad copy of obs).
    batch2 = 777
    key, k_obs2 = jax.random.split(key)
    obs2 = jax.random.normal(k_obs2, (batch2, D_obs), dtype=jnp.float32)
    out2 = network_forward(obs2, padded)
    jax.block_until_ready(out2)
    ref2 = reference_forward(obs2, params)
    assert out2.shape == (batch2, 1)
    assert jnp.allclose(out2, ref2, atol=2e-2, rtol=2e-2)

    print("KERNEL_OK")
</pallas_src>

<mosaic_0001>
module attributes {stable_mosaic.version = 11 : i64} {
  func.func @mlp_kernel(%arg0: i32, %arg1: memref<8x32xf32, #tpu.memory_space<vmem>>, %arg2: memref<32x176xbf16, #tpu.memory_space<vmem>>, %arg3: memref<1x176xf32, #tpu.memory_space<vmem>>, %arg4: memref<176x32xbf16, #tpu.memory_space<vmem>>, %arg5: memref<1x32xf32, #tpu.memory_space<vmem>>, %arg6: memref<32x8xbf16, #tpu.memory_space<vmem>>, %arg7: memref<1x8xf32, #tpu.memory_space<vmem>>, %arg8: memref<1x8xf32, #tpu.memory_space<vmem>>, %arg9: memref<1x1xf32, #tpu.memory_space<vmem>>, %arg10: memref<1x1x8xf32, #tpu.memory_space<vmem>>) attributes {dimension_semantics = [#tpu.dimension_semantics<parallel>], iteration_bounds = array<i64: 1>, scalar_prefetch = 0 : i64, scratch_operands = 0 : i64, tpu.core_type = #tpu.core_type<tc>, window_params = [{transform_indices = @transform_0, window_bounds = array<i64: 8, 32>}, {pipeline_mode = #tpu.pipeline_mode<synchronous>, transform_indices = @transform_1, window_bounds = array<i64: 32, 176>}, {pipeline_mode = #tpu.pipeline_mode<synchronous>, transform_indices = @transform_2, window_bounds = array<i64: 1, 176>}, {pipeline_mode = #tpu.pipeline_mode<synchronous>, transform_indices = @transform_3, window_bounds = array<i64: 176, 32>}, {pipeline_mode = #tpu.pipeline_mode<synchronous>, transform_indices = @transform_4, window_bounds = array<i64: 1, 32>}, {pipeline_mode = #tpu.pipeline_mode<synchronous>, transform_indices = @transform_5, window_bounds = array<i64: 32, 8>}, {pipeline_mode = #tpu.pipeline_mode<synchronous>, transform_indices = @transform_6, window_bounds = array<i64: 1, 8>}, {pipeline_mode = #tpu.pipeline_mode<synchronous>, transform_indices = @transform_7, window_bounds = array<i64: 1, 8>}, {pipeline_mode = #tpu.pipeline_mode<synchronous>, transform_indices = @transform_8, window_bounds = array<i64: 1, 1>}, {transform_indices = @transform_9, window_bounds = array<i64: 1, 1, 8>}]} {
    %c0 = arith.constant 0 : index
    %c0_0 = arith.constant 0 : index
    %0 = vector.load %arg1[%c0, %c0_0] : memref<8x32xf32, #tpu.memory_space<vmem>>, vector<8x32xf32>
    %1 = arith.truncf %0 : vector<8x32xf32> to vector<8x32xbf16>
    %c0_1 = arith.constant 0 : index
    %c0_2 = arith.constant 0 : index
    %2 = vector.load %arg2[%c0_1, %c0_2] : memref<32x176xbf16, #tpu.memory_space<vmem>>, vector<32x176xbf16>
    %cst = arith.constant dense<0.000000e+00> : vector<8x176xf32>
    %3 = tpu.matmul %1, %2, %cst {dimension_numbers = #tpu.dot_dimension_numbers<[1], [0], [0], [1], [0, 0, 1, 1], [], []>} : vector<8x32xbf16>, vector<32x176xbf16>, vector<8x176xf32> -> vector<8x176xf32>
    %c0_3 = arith.constant 0 : index
    %c0_4 = arith.constant 0 : index
    %4 = vector.load %arg3[%c0_3, %c0_4] : memref<1x176xf32, #tpu.memory_space<vmem>>, vector<1x176xf32>
    %5 = vector.broadcast %4 : vector<1x176xf32> to vector<8x176xf32>
    %6 = arith.addf %3, %5 : vector<8x176xf32>
    %7 = math.tanh %6 : vector<8x176xf32>
    %8 = arith.truncf %7 : vector<8x176xf32> to vector<8x176xbf16>
    %c0_5 = arith.constant 0 : index
    %c0_6 = arith.constant 0 : index
    %9 = vector.load %arg4[%c0_5, %c0_6] : memref<176x32xbf16, #tpu.memory_space<vmem>>, vector<176x32xbf16>
    %cst_7 = arith.constant dense<0.000000e+00> : vector<8x32xf32>
    %10 = tpu.matmul %8, %9, %cst_7 {dimension_numbers = #tpu.dot_dimension_numbers<[1], [0], [0], [1], [0, 0, 1, 1], [], []>} : vector<8x176xbf16>, vector<176x32xbf16>, vector<8x32xf32> -> vector<8x32xf32>
    %c0_8 = arith.constant 0 : index
    %c0_9 = arith.constant 0 : index
    %11 = vector.load %arg5[%c0_8, %c0_9] : memref<1x32xf32, #tpu.memory_space<vmem>>, vector<1x32xf32>
    %12 = vector.broadcast %11 : vector<1x32xf32> to vector<8x32xf32>
    %13 = arith.addf %10, %12 : vector<8x32xf32>
    %14 = math.tanh %13 : vector<8x32xf32>
    %15 = arith.truncf %14 : vector<8x32xf32> to vector<8x32xbf16>
    %c0_10 = arith.constant 0 : index
    %c0_11 = arith.constant 0 : index
    %16 = vector.load %arg6[%c0_10, %c0_11] : memref<32x8xbf16, #tpu.memory_space<vmem>>, vector<32x8xbf16>
    %cst_12 = arith.constant dense<0.000000e+00> : vector<8x8xf32>
    %17 = tpu.matmul %15, %16, %cst_12 {dimension_numbers = #tpu.dot_dimension_numbers<[1], [0], [0], [1], [0, 0, 1, 1], [], []>} : vector<8x32xbf16>, vector<32x8xbf16>, vector<8x8xf32> -> vector<8x8xf32>
    %c0_13 = arith.constant 0 : index
    %c0_14 = arith.constant 0 : index
    %18 = vector.load %arg7[%c0_13, %c0_14] : memref<1x8xf32, #tpu.memory_space<vmem>>, vector<1x8xf32>
    %19 = vector.broadcast %18 : vector<1x8xf32> to vector<8x8xf32>
    %20 = arith.addf %17, %19 : vector<8x8xf32>
    %21 = math.tanh %20 : vector<8x8xf32>
    %c0_15 = arith.constant 0 : index
    %c0_16 = arith.constant 0 : index
    %22 = vector.load %arg8[%c0_15, %c0_16] : memref<1x8xf32, #tpu.memory_space<vmem>>, vector<1x8xf32>
    %23 = vector.broadcast %22 : vector<1x8xf32> to vector<8x8xf32>
    %24 = arith.mulf %21, %23 : vector<8x8xf32>
    %25 = tpu.transpose %24, [1, 0] : vector<8x8xf32> -> vector<8x8xf32>
    %cst_17 = arith.constant dense<0.000000e+00> : vector<8xf32>
    %26 = vector.multi_reduction <add>, %25, %cst_17 [0] : vector<8x8xf32> to vector<8xf32>
    %27 = vector.shape_cast %26 : vector<8xf32> to vector<1x8xf32>
    %c0_18 = arith.constant 0 : index
    %c0_19 = arith.constant 0 : index
    %28 = vector.load %arg9[%c0_18, %c0_19] : memref<1x1xf32, #tpu.memory_space<vmem>>, vector<1x1xf32>
    %29 = vector.broadcast %28 : vector<1x1xf32> to vector<1x8xf32>
    %30 = arith.addf %27, %29 : vector<1x8xf32>
    %c0_20 = arith.constant 0 : index
    %c0_21 = arith.constant 0 : index
    %c0_22 = arith.constant 0 : index
    %31 = vector.load %arg10[%c0_20, %c0_21, %c0_22] : memref<1x1x8xf32, #tpu.memory_space<vmem>>, vector<1x1x8xf32>
    %32 = vector.shape_cast %31 : vector<1x1x8xf32> to vector<1x8xf32>
    %33 = vector.shape_cast %30 : vector<1x8xf32> to vector<1x1x8xf32>
    tpu.vector_store %arg10[%c0_20, %c0_21, %c0_22], %33 {strides = array<i32>} : memref<1x1x8xf32, #tpu.memory_space<vmem>>, vector<1x1x8xf32>,
    return
  }
  func.func @transform_0(%arg0: i32) -> (i32, i32) {
    %c0_i32 = arith.constant 0 : i32
    %c0_i32_0 = arith.constant 0 : i32
    return %arg0, %c0_i32 : i32, i32
  }
  func.func @transform_1(%arg0: i32) -> (i32, i32) {
    %c0_i32 = arith.constant 0 : i32
    %c0_i32_0 = arith.constant 0 : i32
    %c0_i32_1 = arith.constant 0 : i32
    return %c0_i32, %c0_i32_0 : i32, i32
  }
  func.func @transform_2(%arg0: i32) -> (i32, i32) {
    %c0_i32 = arith.constant 0 : i32
    %c0_i32_0 = arith.constant 0 : i32
    %c0_i32_1 = arith.constant 0 : i32
    return %c0_i32, %c0_i32_0 : i32, i32
  }
  func.func @transform_3(%arg0: i32) -> (i32, i32) {
    %c0_i32 = arith.constant 0 : i32
    %c0_i32_0 = arith.constant 0 : i32
    %c0_i32_1 = arith.constant 0 : i32
    return %c0_i32, %c0_i32_0 : i32, i32
  }
  func.func @transform_4(%arg0: i32) -> (i32, i32) {
    %c0_i32 = arith.constant 0 : i32
    %c0_i32_0 = arith.constant 0 : i32
    %c0_i32_1 = arith.constant 0 : i32
    return %c0_i32, %c0_i32_0 : i32, i32
  }
  func.func @transform_5(%arg0: i32) -> (i32, i32) {
    %c0_i32 = arith.constant 0 : i32
    %c0_i32_0 = arith.constant 0 : i32
    %c0_i32_1 = arith.constant 0 : i32
    return %c0_i32, %c0_i32_0 : i32, i32
  }
  func.func @transform_6(%arg0: i32) -> (i32, i32) {
    %c0_i32 = arith.constant 0 : i32
    %c0_i32_0 = arith.constant 0 : i32
    %c0_i32_1 = arith.constant 0 : i32
    return %c0_i32, %c0_i32_0 : i32, i32
  }
  func.func @transform_7(%arg0: i32) -> (i32, i32) {
    %c0_i32 = arith.constant 0 : i32
    %c0_i32_0 = arith.constant 0 : i32
    %c0_i32_1 = arith.constant 0 : i32
    return %c0_i32, %c0_i32_0 : i32, i32
  }
  func.func @transform_8(%arg0: i32) -> (i32, i32) {
    %c0_i32 = arith.constant 0 : i32
    %c0_i32_0 = arith.constant 0 : i32
    %c0_i32_1 = arith.constant 0 : i32
    return %c0_i32, %c0_i32_0 : i32, i32
  }
  func.func @transform_9(%arg0: i32) -> (i32, i32, i32) {
    %c0_i32 = arith.constant 0 : i32
    %c0_i32_0 = arith.constant 0 : i32
    %c0_i32_1 = arith.constant 0 : i32
    return %arg0, %c0_i32, %c0_i32_0 : i32, i32, i32
  }
}

</mosaic_0001>

<llo_original>
// kernel: network_forward.1
$region0: #{network_forward.1}
  #allocation0 [shape = 'u32[]', space=smem, size = 0x4, offset = 0x4, fixed_abs, tag = 'smem constant byte address 0x4 - core index']
  #allocation1 [shape = 'u32[72,128]{1,0:T(1,128)}', space=vmem, size = 0x9000, scoped, tag = 'internal scratch']
  #allocation2 [shape = 'f32[1,1]{1,0:T(1,128)S(1)}', space=vmem, size = 0x200, scoped, tag = 'scoped memory for network_forward.1']
  %s0 = inlined_call_operand.vmem [shape: f32[8,32], index: 0, kind: input, shape index: {}]
  %s1 = inlined_call_operand.vmem [shape: bf16[32,176], index: 1, kind: input, shape index: {}]
  %s2 = inlined_call_operand.vmem [shape: f32[1,176], index: 2, kind: input, shape index: {}]
  %s3 = inlined_call_operand.vmem [shape: bf16[176,32], index: 3, kind: input, shape index: {}]
  %s4 = inlined_call_operand.vmem [shape: f32[1,32], index: 4, kind: input, shape index: {}]
  %s5 = inlined_call_operand.vmem [shape: bf16[32,8], index: 5, kind: input, shape index: {}]
  %s6 = inlined_call_operand.vmem [shape: f32[1,8], index: 6, kind: input, shape index: {}]
  %s7 = inlined_call_operand.vmem [shape: f32[1,8], index: 7, kind: input, shape index: {}]
  %s8 = inlined_call_operand.<no memory space> [shape: f32[1,1], index: 8, kind: input, shape index: {}]
  %s9 = inlined_call_operand.hbm [shape: f32[1,1,8], index: 9, kind: output, shape index: {}]
  %s10 = sld [smem:[#allocation0]]
  $region46: #{network_forward.1} parent=0
    _
  %s12 = ssub.s32 1, %s10
  %s13 = scalar_select 0, %s12, %s10
  %v14 = vstv %s8
  %15 = vst [vmem:[#allocation2] sm:$0x1] %v14
  $region1: #{network_forward.1} parent=0
    #allocation3 [shape = 'u8[512]{0}', space=vmem, size = 0x400, scoped, tag = 'output window, operand 0, single buffered']
    #allocation4 [shape = 's32[1]{0}', space=sflag, size = 0x4, scoped, tag = 'scoped memory for network_forward.1']
    %16 = vsyncpa [#allocation4], 0
    // Predicated region
    $region2: #{network_forward.1} parent=1 // pred_check
      _
    $region3: #{network_forward.1} parent=1 // pred_check_branch
      %18 = sbr.rel (0) target = $region5
    $region4: #{network_forward.1} parent=1 // pred_region
      _
    $region5: #{network_forward.1} parent=1 // pred_fallthru
      _
    // Predicated region
    $region6: #{network_forward.1} parent=1 // pred_check
      _
    $region7: #{network_forward.1} parent=1 // pred_check_branch
      %20 = sbr.rel (0) target = $region9
    $region8: #{network_forward.1} parent=1 // pred_region
      _
    $region9: #{network_forward.1} parent=1 // pred_fallthru
      _
    // Predicated region
    $region10: #{network_forward.1} parent=1 // pred_check
      _
    $region11: #{network_forward.1} parent=1 // pred_check_branch
      %22 = sbr.rel (0) target = $region13
    $region12: #{network_forward.1} parent=1 // pred_region
      _
    $region13: #{network_forward.1} parent=1 // pred_fallthru
      _
    // Predicated region
    $region14: #{network_forward.1} parent=1 // pred_check
      _
    $region15: #{network_forward.1} parent=1 // pred_check_branch
      %24 = sbr.rel (0) target = $region17
    $region16: #{network_forward.1} parent=1 // pred_region
      _
    $region17: #{network_forward.1} parent=1 // pred_fallthru
      _
    // Predicated region
    $region18: #{network_forward.1} parent=1 // pred_check
      _
    $region19: #{network_forward.1} parent=1 // pred_check_branch
      %26 = sbr.rel (0) target = $region21
    $region20: #{network_forward.1} parent=1 // pred_region
      _
    $region21: #{network_forward.1} parent=1 // pred_fallthru
      _
    // Predicated region
    $region22: #{network_forward.1} parent=1 // pred_check
      _
    $region23: #{network_forward.1} parent=1 // pred_check_branch
      %28 = sbr.rel (0) target = $region25
    $region24: #{network_forward.1} parent=1 // pred_region
      _
    $region25: #{network_forward.1} parent=1 // pred_fallthru
      _
    // Predicated region
    $region26: #{network_forward.1} parent=1 // pred_check
      _
    $region27: #{network_forward.1} parent=1 // pred_check_branch
      %30 = sbr.rel (0) target = $region29
    $region28: #{network_forward.1} parent=1 // pred_region
      _
    $region29: #{network_forward.1} parent=1 // pred_fallthru
      _
    // Predicated region
    $region30: #{network_forward.1} parent=1 // pred_check
      _
    $region31: #{network_forward.1} parent=1 // pred_check_branch
      %32 = sbr.rel (0) target = $region33
    $region32: #{network_forward.1} parent=1 // pred_region
      _
    $region33: #{network_forward.1} parent=1 // pred_fallthru
      _
    // Predicated region
    $region34: #{network_forward.1} parent=1 // pred_check
      _
    $region35: #{network_forward.1} parent=1 // pred_check_branch
      %34 = sbr.rel (0) target = $region37
    $region36: #{network_forward.1} parent=1 // pred_region
      _
    $region37: #{network_forward.1} parent=1 // pred_fallthru
      _
    %v36 = vld [vmem:[%s0] sm:$0xff]
    %v37 = vpack.c.bf16 %v36, %v36
    %v38 = vld [vmem:[%s1] sm:$0xff]
    %v39 = vld [vmem:[%s1 + $0x8] sm:$0xff]
    %v40 = vld [vmem:[%s1 + $0x10] sm:$0xff]
    %v41 = vld [vmem:[%s1 + $0x18] sm:$0xff]
    %v42 = vld [vmem:[%s2] sm:$0x3]
    %v44 = vperm.slane %v42, 0
    %v45 = vperm.slane %v42, 1
    %v52 = vunpack.c.l.b16 %v38
    %v53 = vunpack.c.h.b16 %v38
    %v54 = vunpack.c.l.b16 %v39
    %v55 = vunpack.c.h.b16 %v39
    %v56 = vunpack.c.l.b16 %v40
    %v57 = vunpack.c.h.b16 %v40
    %v58 = vunpack.c.l.b16 %v41
    %v59 = vunpack.c.h.b16 %v41
    %v60 = vpack.c.b16 %v54, %v52
    %v61 = vpack.c.b16 %v55, %v53
    %v62 = vpack.c.b16 %v58, %v56
    %v63 = vpack.c.b16 %v59, %v57
    %vm68 = vcmask 261120
    %v70 = vsel %vm68, %v37, 0
    %72 = vmatpush.bf16.msra.mxu0 0
    %73 = vmatpush.bf16.msra.mxu0 0
    %74 = vmatpush.bf16.msra.mxu0 0
    %75 = vmatpush.bf16.msra.mxu0 0
    %76 = vmatpush.bf16.msra.mxu0 0
    %77 = vmatpush.bf16.msra.mxu0 0
    %78 = vmatpush.bf16.msra.mxu0 %v62
    %79 = vmatpush.bf16.msra.mxu0 %v60
    %80 = vmatmul.bf16.gmra.mxu0 %v70
    %v81 = vpop.f32.mrf.mxu0
    %v82 = vadd.f32 %v44, %v81
    %v83 = vpop.f32.mrf.mxu0
    %84 = vdwg.mxu0
    %85 = vmatpush.bf16.msra.mxu0 0
    %86 = vmatpush.bf16.msra.mxu0 0
    %87 = vmatpush.bf16.msra.mxu0 0
    %88 = vmatpush.bf16.msra.mxu0 0
    %89 = vmatpush.bf16.msra.mxu0 0
    %90 = vmatpush.bf16.msra.mxu0 0
    %91 = vmatpush.bf16.msra.mxu0 %v63
    %92 = vmatpush.bf16.msra.mxu0 %v61
    %93 = vmatmul.bf16.gmra.mxu0 %v70
    %v94 = vpop.f32.mrf.mxu0
    %v95 = vadd.f32 %v45, %v94
    %v96 = vpop.f32.mrf.mxu0
    %97 = vdwg.mxu0
    %v98 = vtanh.pop %v82
    %v99 = vtanh.pop %v95
    %v100 = vpack.c.bf16 %v98, %v98
    %v101 = vpack.c.bf16 %v99, %v99
    %v102 = vld [vmem:[%s3] sm:$0xf]
    %v103 = vld [vmem:[%s3 + $0x4] sm:$0xf]
    %v104 = vld [vmem:[%s3 + $0x8] sm:$0xf]
    %v105 = vld [vmem:[%s3 + $0xc] sm:$0xf]
    %v106 = vld [vmem:[%s3 + $0x10] sm:$0xf]
    %v107 = vld [vmem:[%s3 + $0x14] sm:$0xf]
    %v108 = vld [vmem:[%s3 + $0x18] sm:$0xf]
    %v109 = vld [vmem:[%s3 + $0x1c] sm:$0xf]
    %v110 = vld [vmem:[%s3 + $0x20] sm:$0xf]
    %v111 = vld [vmem:[%s3 + $0x24] sm:$0xf]
    %v112 = vld [vmem:[%s3 + $0x28] sm:$0xf]
    %v113 = vld [vmem:[%s3 + $0x2c] sm:$0xf]
    %v114 = vld [vmem:[%s3 + $0x30] sm:$0xf]
    %v115 = vld [vmem:[%s3 + $0x34] sm:$0xf]
    %v116 = vld [vmem:[%s3 + $0x38] sm:$0xf]
    %v117 = vld [vmem:[%s3 + $0x3c] sm:$0xf]
    %v118 = vld [vmem:[%s3 + $0x40] sm:$0xf]
    %v119 = vld [vmem:[%s3 + $0x44] sm:$0xf]
    %v120 = vld [vmem:[%s3 + $0x48] sm:$0xf]
    %v121 = vld [vmem:[%s3 + $0x4c] sm:$0xf]
    %v122 = vld [vmem:[%s3 + $0x50] sm:$0xf]
    %v123 = vld [vmem:[%s3 + $0x54] sm:$0xf]
    %v124 = vld [vmem:[%s4] sm:$0x1]
    %v126 = vperm.slane %v124, 0
    %v150 = vunpack.c.l.b16 %v102
    %v151 = vunpack.c.l.b16 %v103
    %v152 = vunpack.c.l.b16 %v104
    %v153 = vunpack.c.l.b16 %v105
    %v154 = vunpack.c.l.b16 %v106
    %v155 = vunpack.c.l.b16 %v107
    %v156 = vunpack.c.l.b16 %v108
    %v157 = vunpack.c.l.b16 %v109
    %v158 = vunpack.c.l.b16 %v110
    %v159 = vunpack.c.l.b16 %v111
    %v160 = vunpack.c.l.b16 %v112
    %v161 = vunpack.c.l.b16 %v113
    %v162 = vunpack.c.l.b16 %v114
    %v163 = vunpack.c.l.b16 %v115
    %v164 = vunpack.c.l.b16 %v116
    %v165 = vunpack.c.l.b16 %v117
    %v166 = vunpack.c.l.b16 %v118
    %v167 = vunpack.c.l.b16 %v119
    %v168 = vunpack.c.l.b16 %v120
    %v169 = vunpack.c.l.b16 %v121
    %v170 = vunpack.c.l.b16 %v122
    %v171 = vunpack.c.l.b16 %v123
    %v172 = vpack.c.b16 %v151, %v150
    %v173 = vpack.c.b16 %v153, %v152
    %v174 = vpack.c.b16 %v155, %v154
    %v175 = vpack.c.b16 %v157, %v156
    %v176 = vpack.c.b16 %v159, %v158
    %v177 = vpack.c.b16 %v161, %v160
    %v178 = vpack.c.b16 %v163, %v162
    %v179 = vpack.c.b16 %v165, %v164
    %v180 = vpack.c.b16 %v167, %v166
    %v181 = vpack.c.b16 %v169, %v168
    %v182 = vpack.c.b16 %v171, %v170
    %vm194 = vcmask 392192
    %v196 = vsel %vm194, %v101, 0
    %198 = vmatpush.bf16.msra.mxu0 %v179
    %199 = vmatpush.bf16.msra.mxu0 %v178
    %200 = vmatpush.bf16.msra.mxu0 %v177
    %201 = vmatpush.bf16.msra.mxu0 %v176
    %202 = vmatpush.bf16.msra.mxu0 %v175
    %203 = vmatpush.bf16.msra.mxu0 %v174
    %204 = vmatpush.bf16.msra.mxu0 %v173
    %205 = vmatpush.bf16.msra.mxu0 %v172
    %206 = vmatmul.bf16.gmra.mxu0 %v100
    %v207 = vpop.f32.mrf.mxu0
    %v208 = vadd.f32 %v126, %v207
    %v209 = vpop.f32.mrf.mxu0
    %210 = vdwg.mxu0
    %211 = vmatpush.bf16.msra.mxu0 0
    %212 = vmatpush.bf16.msra.mxu0 0
    %213 = vmatpush.bf16.msra.mxu0 0
    %214 = vmatpush.bf16.msra.mxu0 0
    %215 = vmatpush.bf16.msra.mxu0 0
    %216 = vmatpush.bf16.msra.mxu0 %v182
    %217 = vmatpush.bf16.msra.mxu0 %v181
    %218 = vmatpush.bf16.msra.mxu0 %v180
    %219 = vmatmul.bf16.gmra.mxu0 %v196
    %v220 = vpop.f32.mrf.mxu0
    %v221 = vadd.f32 %v208, %v220
    %v222 = vpop.f32.mrf.mxu0
    %223 = vdwg.mxu0
    %v224 = vtanh.pop %v221
    %v225 = vpack.c.bf16 %v224, %v224
    %v226 = vld [vmem:[%s5] sm:$0xf]
    %v227 = vld [vmem:[%s5 + $0x4] sm:$0xf]
    %v228 = vld [vmem:[%s5 + $0x8] sm:$0xf]
    %v229 = vld [vmem:[%s5 + $0xc] sm:$0xf]
    %v230 = vld [vmem:[%s6] sm:$0x1]
    %v232 = vperm.slane %v230, 0
    %v238 = vunpack.c.l.b16 %v226
    %v239 = vunpack.c.l.b16 %v227
    %v240 = vunpack.c.l.b16 %v228
    %v241 = vunpack.c.l.b16 %v229
    %v242 = vpack.c.b16 %v239, %v238
    %v243 = vpack.c.b16 %v241, %v240
    %v247 = vsel %vm68, %v225, 0
    %249 = vmatpush.bf16.msra.mxu0 0
    %250 = vmatpush.bf16.msra.mxu0 0
    %251 = vmatpush.bf16.msra.mxu0 0
    %252 = vmatpush.bf16.msra.mxu0 0
    %253 = vmatpush.bf16.msra.mxu0 0
    %254 = vmatpush.bf16.msra.mxu0 0
    %255 = vmatpush.bf16.msra.mxu0 %v243
    %256 = vmatpush.bf16.msra.mxu0 %v242
    %257 = vmatmul.bf16.gmra.mxu0 %v247
    %v258 = vpop.f32.mrf.mxu0
    %v259 = vadd.f32 %v232, %v258
    %v260 = vpop.f32.mrf.mxu0
    %261 = vdwg.mxu0
    %v262 = vtanh.pop %v259
    %v263 = vld [vmem:[%s7] sm:$0x1]
    %v265 = vperm.slane %v263, 0
    %v267 = vmul.f32 %v262, %v265
    %268 = vxpose.xlu0.b32.start [1/16] %v267, 128
    %269 = vxpose.xlu0.b32.cont [2/16] 0.0, 128
    %270 = vxpose.xlu0.b32.cont [3/16] 0.0, 128
    %271 = vxpose.xlu0.b32.cont [4/16] 0.0, 128
    %272 = vxpose.xlu0.b32.cont [5/16] 0.0, 128
    %273 = vxpose.xlu0.b32.cont [6/16] 0.0, 128
    %274 = vxpose.xlu0.b32.cont [7/16] 0.0, 128
    %275 = vxpose.xlu0.b32.cont [8/16] 0.0, 128
    %276 = vxpose.xlu0.b32.cont [9/16] 0.0, 128
    %277 = vxpose.xlu0.b32.cont [10/16] 0.0, 128
    %278 = vxpose.xlu0.b32.cont [11/16] 0.0, 128
    %279 = vxpose.xlu0.b32.cont [12/16] 0.0, 128
    %280 = vxpose.xlu0.b32.cont [13/16] 0.0, 128
    %281 = vxpose.xlu0.b32.cont [14/16] 0.0, 128
    %282 = vxpose.xlu0.b32.cont [15/16] 0.0, 128
    %283 = vxpose.xlu0.b32.end [16/16] 0.0, 128
    %v284 = vpop.trf.xlu0
    %v285 = vpop.trf.xlu0
    %v286 = vpop.trf.xlu0
    %v287 = vpop.trf.xlu0
    %v288 = vpop.trf.xlu0
    %v289 = vpop.trf.xlu0
    %v290 = vpop.trf.xlu0
    %v291 = vpop.trf.xlu0
    %v292 = vpop.trf.xlu0
    %v293 = vpop.trf.xlu0
    %v294 = vpop.trf.xlu0
    %v295 = vpop.trf.xlu0
    %v296 = vpop.trf.xlu0
    %v297 = vpop.trf.xlu0
    %v298 = vpop.trf.xlu0
    %v299 = vpop.trf.xlu0
    %vm300 = vcmask 64512
    %v301 = vsel %vm300, %v284, 0.0
    %v302 = vrot.slane %v301, 4
    %v303 = vadd.f32 %v301, %v302
    %v304 = vrot.slane %v303, 2
    %v305 = vadd.f32 %v303, %v304
    %v306 = vrot.slane %v305, 1
    %v307 = vadd.f32 %v305, %v306
    %v308 = vld [vmem:[#allocation2] sm:$0x1]
    %310 = vset.pattern.permute.xlu0 0
    %311 = vperm.xlu0 %310, %v308
    %v312 = vpop.permute.xlu0 %311
    %v314 = vperm.slane %v312, 0
    %v315 = vadd.f32 %v307, %v314
    %vm316 = vcmask 57344
    %317 = vst.msk [vmem:[#allocation3] sm:$0x1] %vm316, %v315
    // Predicated region
    $region38: #{network_forward.1} parent=1 // pred_check
      _
    $region39: #{network_forward.1} parent=1 // pred_check_branch
      %319 = sbr.rel (0) target = $region41
    $region40: #{network_forward.1} parent=1 // pred_region
      %321 = vsyncadd [#allocation4], 0
      %s323 = sshll.u32 [#allocation3], 4
      %s324 = int_to_ptr.vmem [resolvable:$true] %s323
      %s325 = sshll.u32 %s9, 4
      %s326 = int_to_ptr.hbm [resolvable:$true] %s325
      %328 = dma.vmem_to_hbm [thread:$0]  %s324, 16, %s326, [#allocation4]
    $region41: #{network_forward.1} parent=1 // pred_fallthru
      _
    // Predicated region
    $region42: #{network_forward.1} parent=1 // pred_check
      _
    $region43: #{network_forward.1} parent=1 // pred_check_branch
      %330 = sbr.rel (0) target = $region45
    $region44: #{network_forward.1} parent=1 // pred_region
      %332 = dma.done [#allocation4], 16
    $region45: #{network_forward.1} parent=1 // pred_fallthru
      _
    %333 = vsyncpa [#allocation4], 1

</llo_original>
